<compile_context>
chip_gen: v7x
topology: tpu7x:2x2x1
jax: 0.10.0
libtpu: 0.0.40
codegen_flags: <defaults>
</compile_context>

<pallas_src>
import functools

import jax
import jax.numpy as jnp
from jax import lax
from jax.experimental import pallas as pl
from jax.experimental.pallas import tpu as pltpu


def _csdn_temd_kernel(x_ref, w_ref, b_ref, o_ref, *,
                      H, W, Cin, Cout, dil, padl, Nb):
    """Nb images per grid step; VPU multiply-accumulate dilated 3x3 conv.

    x_ref : (Nb, Cin, Cout, HWp)  zero-padded flat input, replicated over Cout sublanes
    w_ref : (9*Cin, Cout, HW)     f32 weights, lane-broadcast, column masks folded in
    b_ref : (Cout, HW)            f32 bias, lane-broadcast
    o_ref : (Nb, Cout, HW)        flattened NCHW output tile
    """
    HW = H * W

    for n in range(Nb):
        acc = b_ref[...]                                   # (Cout, HW) f32, bias-init
        # 3x3 dilated taps, fully unrolled; each tap is a static lane-offset slice.
        for ky in range(3):
            for kx in range(3):
                off = padl + (ky - 1) * dil * W + (kx - 1) * dil
                tap = ky * 3 + kx
                for c in range(Cin):
                    xb = x_ref[n, c, :, off:off + HW].astype(jnp.float32)  # (Cout, HW)
                    acc = acc + w_ref[tap * Cin + c] * xb                  # 2-vreg FMA
        o_ref[n] = acc.astype(o_ref.dtype)


@functools.partial(jax.jit, static_argnames=("dilation", "padding"))
def csdn_temd_forward(x_nchw, w_oihw, bias, *, dilation=2, padding=2):
    """Forward of CSDN_Temd (Conv2d k=3, s=1, p=2, d=2, groups=1).

    x_nchw: (N, Cin, H, W); returns (N, Cout, H, W) ('same' spatial size, p = d*(k-1)/2).
    """
    N, Cin, H, W = x_nchw.shape
    Cout = w_oihw.shape[0]
    assert padding == dilation, "k=3 'same' dilated conv requires padding == dilation"
    assert W > 2 * dilation, "flat-shift scheme assumes W > 2*dilation"
    HW = H * W

    # Zero-margin width: >= dil*(W+1), rounded up to a lane tile so data is aligned.
    padl = ((dilation * (W + 1) + 127) // 128) * 128
    HWp = HW + 2 * padl

    # --- Input: flatten (free), pad once, replicate over a Cout-sized sublane axis. ---
    x_flat = x_nchw.reshape(N, Cin, HW)
    x_pad = jnp.pad(x_flat, ((0, 0), (0, 0), (padl, padl)))          # (N, Cin, HWp)
    x_b = jnp.broadcast_to(x_pad[:, :, None, :], (N, Cin, Cout, HWp))  # ~128 KB total

    # --- Weights: (9*Cin, Cout, HW) f32 slab, lane-broadcast, masks folded in. ---
    # w2[ky, kx, i, o] = w[o, i, ky, kx]
    w2 = jnp.transpose(w_oihw, (2, 3, 1, 0)).reshape(9, Cin, Cout).astype(jnp.float32)
    col = jnp.arange(HW, dtype=jnp.int32) % W
    m_neg = (col >= dilation).astype(jnp.float32)        # kx == 0: kill left wrap-around
    m_pos = (col < W - dilation).astype(jnp.float32)     # kx == 2: kill right wrap-around
    ones = jnp.ones((HW,), jnp.float32)
    tap_masks = jnp.stack([m_neg, ones, m_pos], axis=0)[jnp.arange(9) % 3]   # (9, HW)
    w_slab = (w2[:, :, :, None] * tap_masks[:, None, None, :]).reshape(9 * Cin, Cout, HW)

    # --- Bias: lane-broadcast once in the wrapper. ---
    b2 = jnp.broadcast_to(bias.astype(jnp.float32)[:, None], (Cout, HW))

    # Split the batch across at most two grid steps: both v7x TCs stay busy while
    # single-TC v5e/v6e pay at most two ~0.35 us per-step overheads.
    if N >= 2 and N % 2 == 0:
        num_blocks, Nb = 2, N // 2
    else:
        num_blocks, Nb = N, 1

    kernel = functools.partial(
        _csdn_temd_kernel, H=H, W=W, Cin=Cin, Cout=Cout,
        dil=dilation, padl=padl, Nb=Nb,
    )

    itemsize = jnp.dtype(x_nchw.dtype).itemsize
    cost = pl.CostEstimate(
        flops=2 * N * HW * 9 * Cin * Cout,
        transcendentals=0,
        bytes_accessed=(itemsize * N * Cin * Cout * HWp      # replicated padded input
                        + 4 * 9 * Cin * Cout * HW             # weight slab
                        + 4 * Cout * HW                       # bias slab
                        + itemsize * N * Cout * HW),          # output
    )

    out_flat = pl.pallas_call(
        kernel,
        out_shape=jax.ShapeDtypeStruct((N, Cout, HW), x_nchw.dtype),
        grid_spec=pltpu.PrefetchScalarGridSpec(
            num_scalar_prefetch=0,
            grid=(num_blocks,),
            in_specs=[
                pl.BlockSpec((Nb, Cin, Cout, HWp), lambda n: (n, 0, 0, 0)),
                pl.BlockSpec((9 * Cin, Cout, HW), lambda n: (0, 0, 0)),
                pl.BlockSpec((Cout, HW), lambda n: (0, 0)),
            ],
            out_specs=pl.BlockSpec((Nb, Cout, HW), lambda n: (n, 0, 0)),
        ),
        compiler_params=pltpu.CompilerParams(
            dimension_semantics=("parallel",)   # 2 grid steps -> both TCs on v7x
        ),
        cost_estimate=cost,
    )(x_b, w_slab, b2)

    # Free reshape: split trailing dim back into (H, W). Output is already NCHW.
    return out_flat.reshape(N, Cout, H, W)


def _reference_conv(x_nchw, w_oihw, bias, *, dilation=2, padding=2):
    out = lax.conv_general_dilated(
        x_nchw,
        w_oihw,
        window_strides=(1, 1),
        padding=((padding, padding), (padding, padding)),
        rhs_dilation=(dilation, dilation),
        dimension_numbers=("NCHW", "OIHW", "NCHW"),
        precision=lax.Precision.HIGHEST,
    )
    return out + bias.reshape(1, -1, 1, 1)


if __name__ == "__main__":
    # Small shapes consistent with the module: in_ch=4, out_ch=8, 16x16 spatial, batch=2.
    N, Cin, H, W = 2, 4, 16, 16
    Cout = 8

    key = jax.random.PRNGKey(0)
    kx, kw, kb = jax.random.split(key, 3)

    x = jax.random.normal(kx, (N, Cin, H, W), dtype=jnp.float32)

    # Deterministic init mimicking PyTorch Conv2d defaults (uniform +/- 1/sqrt(fan_in)).
    fan_in = Cin * 3 * 3
    bound = 1.0 / (fan_in ** 0.5)
    w = jax.random.uniform(kw, (Cout, Cin, 3, 3), jnp.float32, -bound, bound)
    b = jax.random.uniform(kb, (Cout,), jnp.float32, -bound, bound)

    out = jax.block_until_ready(csdn_temd_forward(x, w, b))

    ref = _reference_conv(x, w, b)
    assert out.shape == (N, Cout, H, W), out.shape
    assert jnp.allclose(out, ref, atol=1e-4, rtol=1e-4), float(
        jnp.max(jnp.abs(out - ref))
    )

    print("KERNEL_OK")
</pallas_src>

<mosaic_0001>
module attributes {stable_mosaic.version = 11 : i64} {
  func.func @_csdn_temd_kernel(%arg0: i32, %arg1: memref<1x4x8x512xf32, #tpu.memory_space<vmem>>, %arg2: memref<36x8x256xf32, #tpu.memory_space<vmem>>, %arg3: memref<8x256xf32, #tpu.memory_space<vmem>>, %arg4: memref<1x8x256xf32, #tpu.memory_space<vmem>>) attributes {dimension_semantics = [#tpu.dimension_semantics<parallel>], iteration_bounds = array<i64: 2>, scalar_prefetch = 0 : i64, scratch_operands = 0 : i64, tpu.core_type = #tpu.core_type<tc>, window_params = [{transform_indices = @transform_0, window_bounds = array<i64: 1, 4, 8, 512>}, {pipeline_mode = #tpu.pipeline_mode<synchronous>, transform_indices = @transform_1, window_bounds = array<i64: 36, 8, 256>}, {pipeline_mode = #tpu.pipeline_mode<synchronous>, transform_indices = @transform_2, window_bounds = array<i64: 8, 256>}, {transform_indices = @transform_3, window_bounds = array<i64: 1, 8, 256>}]} {
    %c0 = arith.constant 0 : index
    %c0_0 = arith.constant 0 : index
    %0 = vector.load %arg3[%c0, %c0_0] : memref<8x256xf32, #tpu.memory_space<vmem>>, vector<8x256xf32>
    %c0_1 = arith.constant 0 : index
    %c0_2 = arith.constant 0 : index
    %c0_3 = arith.constant 0 : index
    %c94 = arith.constant 94 : index
    %1 = vector.load %arg1[%c0_1, %c0_2, %c0_3, %c94] : memref<1x4x8x512xf32, #tpu.memory_space<vmem>>, vector<1x1x8x256xf32>
    %2 = vector.shape_cast %1 : vector<1x1x8x256xf32> to vector<8x256xf32>
    %c0_4 = arith.constant 0 : index
    %c0_5 = arith.constant 0 : index
    %c0_6 = arith.constant 0 : index
    %3 = vector.load %arg2[%c0_4, %c0_5, %c0_6] : memref<36x8x256xf32, #tpu.memory_space<vmem>>, vector<1x8x256xf32>
    %4 = vector.shape_cast %3 : vector<1x8x256xf32> to vector<8x256xf32>
    %5 = arith.mulf %4, %2 : vector<8x256xf32>
    %6 = arith.addf %0, %5 : vector<8x256xf32>
    %c0_7 = arith.constant 0 : index
    %c1 = arith.constant 1 : index
    %c0_8 = arith.constant 0 : index
    %c94_9 = arith.constant 94 : index
    %7 = vector.load %arg1[%c0_7, %c1, %c0_8, %c94_9] : memref<1x4x8x512xf32, #tpu.memory_space<vmem>>, vector<1x1x8x256xf32>
    %8 = vector.shape_cast %7 : vector<1x1x8x256xf32> to vector<8x256xf32>
    %c1_10 = arith.constant 1 : index
    %c0_11 = arith.constant 0 : index
    %c0_12 = arith.constant 0 : index
    %9 = vector.load %arg2[%c1_10, %c0_11, %c0_12] : memref<36x8x256xf32, #tpu.memory_space<vmem>>, vector<1x8x256xf32>
    %10 = vector.shape_cast %9 : vector<1x8x256xf32> to vector<8x256xf32>
    %11 = arith.mulf %10, %8 : vector<8x256xf32>
    %12 = arith.addf %6, %11 : vector<8x256xf32>
    %c0_13 = arith.constant 0 : index
    %c2 = arith.constant 2 : index
    %c0_14 = arith.constant 0 : index
    %c94_15 = arith.constant 94 : index
    %13 = vector.load %arg1[%c0_13, %c2, %c0_14, %c94_15] : memref<1x4x8x512xf32, #tpu.memory_space<vmem>>, vector<1x1x8x256xf32>
    %14 = vector.shape_cast %13 : vector<1x1x8x256xf32> to vector<8x256xf32>
    %c2_16 = arith.constant 2 : index
    %c0_17 = arith.constant 0 : index
    %c0_18 = arith.constant 0 : index
    %15 = vector.load %arg2[%c2_16, %c0_17, %c0_18] : memref<36x8x256xf32, #tpu.memory_space<vmem>>, vector<1x8x256xf32>
    %16 = vector.shape_cast %15 : vector<1x8x256xf32> to vector<8x256xf32>
    %17 = arith.mulf %16, %14 : vector<8x256xf32>
    %18 = arith.addf %12, %17 : vector<8x256xf32>
    %c0_19 = arith.constant 0 : index
    %c3 = arith.constant 3 : index
    %c0_20 = arith.constant 0 : index
    %c94_21 = arith.constant 94 : index
    %19 = vector.load %arg1[%c0_19, %c3, %c0_20, %c94_21] : memref<1x4x8x512xf32, #tpu.memory_space<vmem>>, vector<1x1x8x256xf32>
    %20 = vector.shape_cast %19 : vector<1x1x8x256xf32> to vector<8x256xf32>
    %c3_22 = arith.constant 3 : index
    %c0_23 = arith.constant 0 : index
    %c0_24 = arith.constant 0 : index
    %21 = vector.load %arg2[%c3_22, %c0_23, %c0_24] : memref<36x8x256xf32, #tpu.memory_space<vmem>>, vector<1x8x256xf32>
    %22 = vector.shape_cast %21 : vector<1x8x256xf32> to vector<8x256xf32>
    %23 = arith.mulf %22, %20 : vector<8x256xf32>
    %24 = arith.addf %18, %23 : vector<8x256xf32>
    %c0_25 = arith.constant 0 : index
    %c0_26 = arith.constant 0 : index
    %c0_27 = arith.constant 0 : index
    %c96 = arith.constant 96 : index
    %25 = vector.load %arg1[%c0_25, %c0_26, %c0_27, %c96] : memref<1x4x8x512xf32, #tpu.memory_space<vmem>>, vector<1x1x8x256xf32>
    %26 = vector.shape_cast %25 : vector<1x1x8x256xf32> to vector<8x256xf32>
    %c4 = arith.constant 4 : index
    %c0_28 = arith.constant 0 : index
    %c0_29 = arith.constant 0 : index
    %27 = vector.load %arg2[%c4, %c0_28, %c0_29] : memref<36x8x256xf32, #tpu.memory_space<vmem>>, vector<1x8x256xf32>
    %28 = vector.shape_cast %27 : vector<1x8x256xf32> to vector<8x256xf32>
    %29 = arith.mulf %28, %26 : vector<8x256xf32>
    %30 = arith.addf %24, %29 : vector<8x256xf32>
    %c0_30 = arith.constant 0 : index
    %c1_31 = arith.constant 1 : index
    %c0_32 = arith.constant 0 : index
    %c96_33 = arith.constant 96 : index
    %31 = vector.load %arg1[%c0_30, %c1_31, %c0_32, %c96_33] : memref<1x4x8x512xf32, #tpu.memory_space<vmem>>, vector<1x1x8x256xf32>
    %32 = vector.shape_cast %31 : vector<1x1x8x256xf32> to vector<8x256xf32>
    %c5 = arith.constant 5 : index
    %c0_34 = arith.constant 0 : index
    %c0_35 = arith.constant 0 : index
    %33 = vector.load %arg2[%c5, %c0_34, %c0_35] : memref<36x8x256xf32, #tpu.memory_space<vmem>>, vector<1x8x256xf32>
    %34 = vector.shape_cast %33 : vector<1x8x256xf32> to vector<8x256xf32>
    %35 = arith.mulf %34, %32 : vector<8x256xf32>
    %36 = arith.addf %30, %35 : vector<8x256xf32>
    %c0_36 = arith.constant 0 : index
    %c2_37 = arith.constant 2 : index
    %c0_38 = arith.constant 0 : index
    %c96_39 = arith.constant 96 : index
    %37 = vector.load %arg1[%c0_36, %c2_37, %c0_38, %c96_39] : memref<1x4x8x512xf32, #tpu.memory_space<vmem>>, vector<1x1x8x256xf32>
    %38 = vector.shape_cast %37 : vector<1x1x8x256xf32> to vector<8x256xf32>
    %c6 = arith.constant 6 : index
    %c0_40 = arith.constant 0 : index
    %c0_41 = arith.constant 0 : index
    %39 = vector.load %arg2[%c6, %c0_40, %c0_41] : memref<36x8x256xf32, #tpu.memory_space<vmem>>, vector<1x8x256xf32>
    %40 = vector.shape_cast %39 : vector<1x8x256xf32> to vector<8x256xf32>
    %41 = arith.mulf %40, %38 : vector<8x256xf32>
    %42 = arith.addf %36, %41 : vector<8x256xf32>
    %c0_42 = arith.constant 0 : index
    %c3_43 = arith.constant 3 : index
    %c0_44 = arith.constant 0 : index
    %c96_45 = arith.constant 96 : index
    %43 = vector.load %arg1[%c0_42, %c3_43, %c0_44, %c96_45] : memref<1x4x8x512xf32, #tpu.memory_space<vmem>>, vector<1x1x8x256xf32>
    %44 = vector.shape_cast %43 : vector<1x1x8x256xf32> to vector<8x256xf32>
    %c7 = arith.constant 7 : index
    %c0_46 = arith.constant 0 : index
    %c0_47 = arith.constant 0 : index
    %45 = vector.load %arg2[%c7, %c0_46, %c0_47] : memref<36x8x256xf32, #tpu.memory_space<vmem>>, vector<1x8x256xf32>
    %46 = vector.shape_cast %45 : vector<1x8x256xf32> to vector<8x256xf32>
    %47 = arith.mulf %46, %44 : vector<8x256xf32>
    %48 = arith.addf %42, %47 : vector<8x256xf32>
    %c0_48 = arith.constant 0 : index
    %c0_49 = arith.constant 0 : index
    %c0_50 = arith.constant 0 : index
    %c98 = arith.constant 98 : index
    %49 = vector.load %arg1[%c0_48, %c0_49, %c0_50, %c98] : memref<1x4x8x512xf32, #tpu.memory_space<vmem>>, vector<1x1x8x256xf32>
    %50 = vector.shape_cast %49 : vector<1x1x8x256xf32> to vector<8x256xf32>
    %c8 = arith.constant 8 : index
    %c0_51 = arith.constant 0 : index
    %c0_52 = arith.constant 0 : index
    %51 = vector.load %arg2[%c8, %c0_51, %c0_52] : memref<36x8x256xf32, #tpu.memory_space<vmem>>, vector<1x8x256xf32>
    %52 = vector.shape_cast %51 : vector<1x8x256xf32> to vector<8x256xf32>
    %53 = arith.mulf %52, %50 : vector<8x256xf32>
    %54 = arith.addf %48, %53 : vector<8x256xf32>
    %c0_53 = arith.constant 0 : index
    %c1_54 = arith.constant 1 : index
    %c0_55 = arith.constant 0 : index
    %c98_56 = arith.constant 98 : index
    %55 = vector.load %arg1[%c0_53, %c1_54, %c0_55, %c98_56] : memref<1x4x8x512xf32, #tpu.memory_space<vmem>>, vector<1x1x8x256xf32>
    %56 = vector.shape_cast %55 : vector<1x1x8x256xf32> to vector<8x256xf32>
    %c9 = arith.constant 9 : index
    %c0_57 = arith.constant 0 : index
    %c0_58 = arith.constant 0 : index
    %57 = vector.load %arg2[%c9, %c0_57, %c0_58] : memref<36x8x256xf32, #tpu.memory_space<vmem>>, vector<1x8x256xf32>
    %58 = vector.shape_cast %57 : vector<1x8x256xf32> to vector<8x256xf32>
    %59 = arith.mulf %58, %56 : vector<8x256xf32>
    %60 = arith.addf %54, %59 : vector<8x256xf32>
    %c0_59 = arith.constant 0 : index
    %c2_60 = arith.constant 2 : index
    %c0_61 = arith.constant 0 : index
    %c98_62 = arith.constant 98 : index
    %61 = vector.load %arg1[%c0_59, %c2_60, %c0_61, %c98_62] : memref<1x4x8x512xf32, #tpu.memory_space<vmem>>, vector<1x1x8x256xf32>
    %62 = vector.shape_cast %61 : vector<1x1x8x256xf32> to vector<8x256xf32>
    %c10 = arith.constant 10 : index
    %c0_63 = arith.constant 0 : index
    %c0_64 = arith.constant 0 : index
    %63 = vector.load %arg2[%c10, %c0_63, %c0_64] : memref<36x8x256xf32, #tpu.memory_space<vmem>>, vector<1x8x256xf32>
    %64 = vector.shape_cast %63 : vector<1x8x256xf32> to vector<8x256xf32>
    %65 = arith.mulf %64, %62 : vector<8x256xf32>
    %66 = arith.addf %60, %65 : vector<8x256xf32>
    %c0_65 = arith.constant 0 : index
    %c3_66 = arith.constant 3 : index
    %c0_67 = arith.constant 0 : index
    %c98_68 = arith.constant 98 : index
    %67 = vector.load %arg1[%c0_65, %c3_66, %c0_67, %c98_68] : memref<1x4x8x512xf32, #tpu.memory_space<vmem>>, vector<1x1x8x256xf32>
    %68 = vector.shape_cast %67 : vector<1x1x8x256xf32> to vector<8x256xf32>
    %c11 = arith.constant 11 : index
    %c0_69 = arith.constant 0 : index
    %c0_70 = arith.constant 0 : index
    %69 = vector.load %arg2[%c11, %c0_69, %c0_70] : memref<36x8x256xf32, #tpu.memory_space<vmem>>, vector<1x8x256xf32>
    %70 = vector.shape_cast %69 : vector<1x8x256xf32> to vector<8x256xf32>
    %71 = arith.mulf %70, %68 : vector<8x256xf32>
    %72 = arith.addf %66, %71 : vector<8x256xf32>
    %c0_71 = arith.constant 0 : index
    %c0_72 = arith.constant 0 : index
    %c0_73 = arith.constant 0 : index
    %c126 = arith.constant 126 : index
    %73 = vector.load %arg1[%c0_71, %c0_72, %c0_73, %c126] : memref<1x4x8x512xf32, #tpu.memory_space<vmem>>, vector<1x1x8x256xf32>
    %74 = vector.shape_cast %73 : vector<1x1x8x256xf32> to vector<8x256xf32>
    %c12 = arith.constant 12 : index
    %c0_74 = arith.constant 0 : index
    %c0_75 = arith.constant 0 : index
    %75 = vector.load %arg2[%c12, %c0_74, %c0_75] : memref<36x8x256xf32, #tpu.memory_space<vmem>>, vector<1x8x256xf32>
    %76 = vector.shape_cast %75 : vector<1x8x256xf32> to vector<8x256xf32>
    %77 = arith.mulf %76, %74 : vector<8x256xf32>
    %78 = arith.addf %72, %77 : vector<8x256xf32>
    %c0_76 = arith.constant 0 : index
    %c1_77 = arith.constant 1 : index
    %c0_78 = arith.constant 0 : index
    %c126_79 = arith.constant 126 : index
    %79 = vector.load %arg1[%c0_76, %c1_77, %c0_78, %c126_79] : memref<1x4x8x512xf32, #tpu.memory_space<vmem>>, vector<1x1x8x256xf32>
    %80 = vector.shape_cast %79 : vector<1x1x8x256xf32> to vector<8x256xf32>
    %c13 = arith.constant 13 : index
    %c0_80 = arith.constant 0 : index
    %c0_81 = arith.constant 0 : index
    %81 = vector.load %arg2[%c13, %c0_80, %c0_81] : memref<36x8x256xf32, #tpu.memory_space<vmem>>, vector<1x8x256xf32>
    %82 = vector.shape_cast %81 : vector<1x8x256xf32> to vector<8x256xf32>
    %83 = arith.mulf %82, %80 : vector<8x256xf32>
    %84 = arith.addf %78, %83 : vector<8x256xf32>
    %c0_82 = arith.constant 0 : index
    %c2_83 = arith.constant 2 : index
    %c0_84 = arith.constant 0 : index
    %c126_85 = arith.constant 126 : index
    %85 = vector.load %arg1[%c0_82, %c2_83, %c0_84, %c126_85] : memref<1x4x8x512xf32, #tpu.memory_space<vmem>>, vector<1x1x8x256xf32>
    %86 = vector.shape_cast %85 : vector<1x1x8x256xf32> to vector<8x256xf32>
    %c14 = arith.constant 14 : index
    %c0_86 = arith.constant 0 : index
    %c0_87 = arith.constant 0 : index
    %87 = vector.load %arg2[%c14, %c0_86, %c0_87] : memref<36x8x256xf32, #tpu.memory_space<vmem>>, vector<1x8x256xf32>
    %88 = vector.shape_cast %87 : vector<1x8x256xf32> to vector<8x256xf32>
    %89 = arith.mulf %88, %86 : vector<8x256xf32>
    %90 = arith.addf %84, %89 : vector<8x256xf32>
    %c0_88 = arith.constant 0 : index
    %c3_89 = arith.constant 3 : index
    %c0_90 = arith.constant 0 : index
    %c126_91 = arith.constant 126 : index
    %91 = vector.load %arg1[%c0_88, %c3_89, %c0_90, %c126_91] : memref<1x4x8x512xf32, #tpu.memory_space<vmem>>, vector<1x1x8x256xf32>
    %92 = vector.shape_cast %91 : vector<1x1x8x256xf32> to vector<8x256xf32>
    %c15 = arith.constant 15 : index
    %c0_92 = arith.constant 0 : index
    %c0_93 = arith.constant 0 : index
    %93 = vector.load %arg2[%c15, %c0_92, %c0_93] : memref<36x8x256xf32, #tpu.memory_space<vmem>>, vector<1x8x256xf32>
    %94 = vector.shape_cast %93 : vector<1x8x256xf32> to vector<8x256xf32>
    %95 = arith.mulf %94, %92 : vector<8x256xf32>
    %96 = arith.addf %90, %95 : vector<8x256xf32>
    %c0_94 = arith.constant 0 : index
    %c0_95 = arith.constant 0 : index
    %c0_96 = arith.constant 0 : index
    %c128 = arith.constant 128 : index
    %97 = vector.load %arg1[%c0_94, %c0_95, %c0_96, %c128] : memref<1x4x8x512xf32, #tpu.memory_space<vmem>>, vector<1x1x8x256xf32>
    %98 = vector.shape_cast %97 : vector<1x1x8x256xf32> to vector<8x256xf32>
    %c16 = arith.constant 16 : index
    %c0_97 = arith.constant 0 : index
    %c0_98 = arith.constant 0 : index
    %99 = vector.load %arg2[%c16, %c0_97, %c0_98] : memref<36x8x256xf32, #tpu.memory_space<vmem>>, vector<1x8x256xf32>
    %100 = vector.shape_cast %99 : vector<1x8x256xf32> to vector<8x256xf32>
    %101 = arith.mulf %100, %98 : vector<8x256xf32>
    %102 = arith.addf %96, %101 : vector<8x256xf32>
    %c0_99 = arith.constant 0 : index
    %c1_100 = arith.constant 1 : index
    %c0_101 = arith.constant 0 : index
    %c128_102 = arith.constant 128 : index
    %103 = vector.load %arg1[%c0_99, %c1_100, %c0_101, %c128_102] : memref<1x4x8x512xf32, #tpu.memory_space<vmem>>, vector<1x1x8x256xf32>
    %104 = vector.shape_cast %103 : vector<1x1x8x256xf32> to vector<8x256xf32>
    %c17 = arith.constant 17 : index
    %c0_103 = arith.constant 0 : index
    %c0_104 = arith.constant 0 : index
    %105 = vector.load %arg2[%c17, %c0_103, %c0_104] : memref<36x8x256xf32, #tpu.memory_space<vmem>>, vector<1x8x256xf32>
    %106 = vector.shape_cast %105 : vector<1x8x256xf32> to vector<8x256xf32>
    %107 = arith.mulf %106, %104 : vector<8x256xf32>
    %108 = arith.addf %102, %107 : vector<8x256xf32>
    %c0_105 = arith.constant 0 : index
    %c2_106 = arith.constant 2 : index
    %c0_107 = arith.constant 0 : index
    %c128_108 = arith.constant 128 : index
    %109 = vector.load %arg1[%c0_105, %c2_106, %c0_107, %c128_108] : memref<1x4x8x512xf32, #tpu.memory_space<vmem>>, vector<1x1x8x256xf32>
    %110 = vector.shape_cast %109 : vector<1x1x8x256xf32> to vector<8x256xf32>
    %c18 = arith.constant 18 : index
    %c0_109 = arith.constant 0 : index
    %c0_110 = arith.constant 0 : index
    %111 = vector.load %arg2[%c18, %c0_109, %c0_110] : memref<36x8x256xf32, #tpu.memory_space<vmem>>, vector<1x8x256xf32>
    %112 = vector.shape_cast %111 : vector<1x8x256xf32> to vector<8x256xf32>
    %113 = arith.mulf %112, %110 : vector<8x256xf32>
    %114 = arith.addf %108, %113 : vector<8x256xf32>
    %c0_111 = arith.constant 0 : index
    %c3_112 = arith.constant 3 : index
    %c0_113 = arith.constant 0 : index
    %c128_114 = arith.constant 128 : index
    %115 = vector.load %arg1[%c0_111, %c3_112, %c0_113, %c128_114] : memref<1x4x8x512xf32, #tpu.memory_space<vmem>>, vector<1x1x8x256xf32>
    %116 = vector.shape_cast %115 : vector<1x1x8x256xf32> to vector<8x256xf32>
    %c19 = arith.constant 19 : index
    %c0_115 = arith.constant 0 : index
    %c0_116 = arith.constant 0 : index
    %117 = vector.load %arg2[%c19, %c0_115, %c0_116] : memref<36x8x256xf32, #tpu.memory_space<vmem>>, vector<1x8x256xf32>
    %118 = vector.shape_cast %117 : vector<1x8x256xf32> to vector<8x256xf32>
    %119 = arith.mulf %118, %116 : vector<8x256xf32>
    %120 = arith.addf %114, %119 : vector<8x256xf32>
    %c0_117 = arith.constant 0 : index
    %c0_118 = arith.constant 0 : index
    %c0_119 = arith.constant 0 : index
    %c130 = arith.constant 130 : index
    %121 = vector.load %arg1[%c0_117, %c0_118, %c0_119, %c130] : memref<1x4x8x512xf32, #tpu.memory_space<vmem>>, vector<1x1x8x256xf32>
    %122 = vector.shape_cast %121 : vector<1x1x8x256xf32> to vector<8x256xf32>
    %c20 = arith.constant 20 : index
    %c0_120 = arith.constant 0 : index
    %c0_121 = arith.constant 0 : index
    %123 = vector.load %arg2[%c20, %c0_120, %c0_121] : memref<36x8x256xf32, #tpu.memory_space<vmem>>, vector<1x8x256xf32>
    %124 = vector.shape_cast %123 : vector<1x8x256xf32> to vector<8x256xf32>
    %125 = arith.mulf %124, %122 : vector<8x256xf32>
    %126 = arith.addf %120, %125 : vector<8x256xf32>
    %c0_122 = arith.constant 0 : index
    %c1_123 = arith.constant 1 : index
    %c0_124 = arith.constant 0 : index
    %c130_125 = arith.constant 130 : index
    %127 = vector.load %arg1[%c0_122, %c1_123, %c0_124, %c130_125] : memref<1x4x8x512xf32, #tpu.memory_space<vmem>>, vector<1x1x8x256xf32>
    %128 = vector.shape_cast %127 : vector<1x1x8x256xf32> to vector<8x256xf32>
    %c21 = arith.constant 21 : index
    %c0_126 = arith.constant 0 : index
    %c0_127 = arith.constant 0 : index
    %129 = vector.load %arg2[%c21, %c0_126, %c0_127] : memref<36x8x256xf32, #tpu.memory_space<vmem>>, vector<1x8x256xf32>
    %130 = vector.shape_cast %129 : vector<1x8x256xf32> to vector<8x256xf32>
    %131 = arith.mulf %130, %128 : vector<8x256xf32>
    %132 = arith.addf %126, %131 : vector<8x256xf32>
    %c0_128 = arith.constant 0 : index
    %c2_129 = arith.constant 2 : index
    %c0_130 = arith.constant 0 : index
    %c130_131 = arith.constant 130 : index
    %133 = vector.load %arg1[%c0_128, %c2_129, %c0_130, %c130_131] : memref<1x4x8x512xf32, #tpu.memory_space<vmem>>, vector<1x1x8x256xf32>
    %134 = vector.shape_cast %133 : vector<1x1x8x256xf32> to vector<8x256xf32>
    %c22 = arith.constant 22 : index
    %c0_132 = arith.constant 0 : index
    %c0_133 = arith.constant 0 : index
    %135 = vector.load %arg2[%c22, %c0_132, %c0_133] : memref<36x8x256xf32, #tpu.memory_space<vmem>>, vector<1x8x256xf32>
    %136 = vector.shape_cast %135 : vector<1x8x256xf32> to vector<8x256xf32>
    %137 = arith.mulf %136, %134 : vector<8x256xf32>
    %138 = arith.addf %132, %137 : vector<8x256xf32>
    %c0_134 = arith.constant 0 : index
    %c3_135 = arith.constant 3 : index
    %c0_136 = arith.constant 0 : index
    %c130_137 = arith.constant 130 : index
    %139 = vector.load %arg1[%c0_134, %c3_135, %c0_136, %c130_137] : memref<1x4x8x512xf32, #tpu.memory_space<vmem>>, vector<1x1x8x256xf32>
    %140 = vector.shape_cast %139 : vector<1x1x8x256xf32> to vector<8x256xf32>
    %c23 = arith.constant 23 : index
    %c0_138 = arith.constant 0 : index
    %c0_139 = arith.constant 0 : index
    %141 = vector.load %arg2[%c23, %c0_138, %c0_139] : memref<36x8x256xf32, #tpu.memory_space<vmem>>, vector<1x8x256xf32>
    %142 = vector.shape_cast %141 : vector<1x8x256xf32> to vector<8x256xf32>
    %143 = arith.mulf %142, %140 : vector<8x256xf32>
    %144 = arith.addf %138, %143 : vector<8x256xf32>
    %c0_140 = arith.constant 0 : index
    %c0_141 = arith.constant 0 : index
    %c0_142 = arith.constant 0 : index
    %c158 = arith.constant 158 : index
    %145 = vector.load %arg1[%c0_140, %c0_141, %c0_142, %c158] : memref<1x4x8x512xf32, #tpu.memory_space<vmem>>, vector<1x1x8x256xf32>
    %146 = vector.shape_cast %145 : vector<1x1x8x256xf32> to vector<8x256xf32>
    %c24 = arith.constant 24 : index
    %c0_143 = arith.constant 0 : index
    %c0_144 = arith.constant 0 : index
    %147 = vector.load %arg2[%c24, %c0_143, %c0_144] : memref<36x8x256xf32, #tpu.memory_space<vmem>>, vector<1x8x256xf32>
    %148 = vector.shape_cast %147 : vector<1x8x256xf32> to vector<8x256xf32>
    %149 = arith.mulf %148, %146 : vector<8x256xf32>
    %150 = arith.addf %144, %149 : vector<8x256xf32>
    %c0_145 = arith.constant 0 : index
    %c1_146 = arith.constant 1 : index
    %c0_147 = arith.constant 0 : index
    %c158_148 = arith.constant 158 : index
    %151 = vector.load %arg1[%c0_145, %c1_146, %c0_147, %c158_148] : memref<1x4x8x512xf32, #tpu.memory_space<vmem>>, vector<1x1x8x256xf32>
    %152 = vector.shape_cast %151 : vector<1x1x8x256xf32> to vector<8x256xf32>
    %c25 = arith.constant 25 : index
    %c0_149 = arith.constant 0 : index
    %c0_150 = arith.constant 0 : index
    %153 = vector.load %arg2[%c25, %c0_149, %c0_150] : memref<36x8x256xf32, #tpu.memory_space<vmem>>, vector<1x8x256xf32>
    %154 = vector.shape_cast %153 : vector<1x8x256xf32> to vector<8x256xf32>
    %155 = arith.mulf %154, %152 : vector<8x256xf32>
    %156 = arith.addf %150, %155 : vector<8x256xf32>
    %c0_151 = arith.constant 0 : index
    %c2_152 = arith.constant 2 : index
    %c0_153 = arith.constant 0 : index
    %c158_154 = arith.constant 158 : index
    %157 = vector.load %arg1[%c0_151, %c2_152, %c0_153, %c158_154] : memref<1x4x8x512xf32, #tpu.memory_space<vmem>>, vector<1x1x8x256xf32>
    %158 = vector.shape_cast %157 : vector<1x1x8x256xf32> to vector<8x256xf32>
    %c26 = arith.constant 26 : index
    %c0_155 = arith.constant 0 : index
    %c0_156 = arith.constant 0 : index
    %159 = vector.load %arg2[%c26, %c0_155, %c0_156] : memref<36x8x256xf32, #tpu.memory_space<vmem>>, vector<1x8x256xf32>
    %160 = vector.shape_cast %159 : vector<1x8x256xf32> to vector<8x256xf32>
    %161 = arith.mulf %160, %158 : vector<8x256xf32>
    %162 = arith.addf %156, %161 : vector<8x256xf32>
    %c0_157 = arith.constant 0 : index
    %c3_158 = arith.constant 3 : index
    %c0_159 = arith.constant 0 : index
    %c158_160 = arith.constant 158 : index
    %163 = vector.load %arg1[%c0_157, %c3_158, %c0_159, %c158_160] : memref<1x4x8x512xf32, #tpu.memory_space<vmem>>, vector<1x1x8x256xf32>
    %164 = vector.shape_cast %163 : vector<1x1x8x256xf32> to vector<8x256xf32>
    %c27 = arith.constant 27 : index
    %c0_161 = arith.constant 0 : index
    %c0_162 = arith.constant 0 : index
    %165 = vector.load %arg2[%c27, %c0_161, %c0_162] : memref<36x8x256xf32, #tpu.memory_space<vmem>>, vector<1x8x256xf32>
    %166 = vector.shape_cast %165 : vector<1x8x256xf32> to vector<8x256xf32>
    %167 = arith.mulf %166, %164 : vector<8x256xf32>
    %168 = arith.addf %162, %167 : vector<8x256xf32>
    %c0_163 = arith.constant 0 : index
    %c0_164 = arith.constant 0 : index
    %c0_165 = arith.constant 0 : index
    %c160 = arith.constant 160 : index
    %169 = vector.load %arg1[%c0_163, %c0_164, %c0_165, %c160] : memref<1x4x8x512xf32, #tpu.memory_space<vmem>>, vector<1x1x8x256xf32>
    %170 = vector.shape_cast %169 : vector<1x1x8x256xf32> to vector<8x256xf32>
    %c28 = arith.constant 28 : index
    %c0_166 = arith.constant 0 : index
    %c0_167 = arith.constant 0 : index
    %171 = vector.load %arg2[%c28, %c0_166, %c0_167] : memref<36x8x256xf32, #tpu.memory_space<vmem>>, vector<1x8x256xf32>
    %172 = vector.shape_cast %171 : vector<1x8x256xf32> to vector<8x256xf32>
    %173 = arith.mulf %172, %170 : vector<8x256xf32>
    %174 = arith.addf %168, %173 : vector<8x256xf32>
    %c0_168 = arith.constant 0 : index
    %c1_169 = arith.constant 1 : index
    %c0_170 = arith.constant 0 : index
    %c160_171 = arith.constant 160 : index
    %175 = vector.load %arg1[%c0_168, %c1_169, %c0_170, %c160_171] : memref<1x4x8x512xf32, #tpu.memory_space<vmem>>, vector<1x1x8x256xf32>
    %176 = vector.shape_cast %175 : vector<1x1x8x256xf32> to vector<8x256xf32>
    %c29 = arith.constant 29 : index
    %c0_172 = arith.constant 0 : index
    %c0_173 = arith.constant 0 : index
    %177 = vector.load %arg2[%c29, %c0_172, %c0_173] : memref<36x8x256xf32, #tpu.memory_space<vmem>>, vector<1x8x256xf32>
    %178 = vector.shape_cast %177 : vector<1x8x256xf32> to vector<8x256xf32>
    %179 = arith.mulf %178, %176 : vector<8x256xf32>
    %180 = arith.addf %174, %179 : vector<8x256xf32>
    %c0_174 = arith.constant 0 : index
    %c2_175 = arith.constant 2 : index
    %c0_176 = arith.constant 0 : index
    %c160_177 = arith.constant 160 : index
    %181 = vector.load %arg1[%c0_174, %c2_175, %c0_176, %c160_177] : memref<1x4x8x512xf32, #tpu.memory_space<vmem>>, vector<1x1x8x256xf32>
    %182 = vector.shape_cast %181 : vector<1x1x8x256xf32> to vector<8x256xf32>
    %c30 = arith.constant 30 : index
    %c0_178 = arith.constant 0 : index
    %c0_179 = arith.constant 0 : index
    %183 = vector.load %arg2[%c30, %c0_178, %c0_179] : memref<36x8x256xf32, #tpu.memory_space<vmem>>, vector<1x8x256xf32>
    %184 = vector.shape_cast %183 : vector<1x8x256xf32> to vector<8x256xf32>
    %185 = arith.mulf %184, %182 : vector<8x256xf32>
    %186 = arith.addf %180, %185 : vector<8x256xf32>
    %c0_180 = arith.constant 0 : index
    %c3_181 = arith.constant 3 : index
    %c0_182 = arith.constant 0 : index
    %c160_183 = arith.constant 160 : index
    %187 = vector.load %arg1[%c0_180, %c3_181, %c0_182, %c160_183] : memref<1x4x8x512xf32, #tpu.memory_space<vmem>>, vector<1x1x8x256xf32>
    %188 = vector.shape_cast %187 : vector<1x1x8x256xf32> to vector<8x256xf32>
    %c31 = arith.constant 31 : index
    %c0_184 = arith.constant 0 : index
    %c0_185 = arith.constant 0 : index
    %189 = vector.load %arg2[%c31, %c0_184, %c0_185] : memref<36x8x256xf32, #tpu.memory_space<vmem>>, vector<1x8x256xf32>
    %190 = vector.shape_cast %189 : vector<1x8x256xf32> to vector<8x256xf32>
    %191 = arith.mulf %190, %188 : vector<8x256xf32>
    %192 = arith.addf %186, %191 : vector<8x256xf32>
    %c0_186 = arith.constant 0 : index
    %c0_187 = arith.constant 0 : index
    %c0_188 = arith.constant 0 : index
    %c162 = arith.constant 162 : index
    %193 = vector.load %arg1[%c0_186, %c0_187, %c0_188, %c162] : memref<1x4x8x512xf32, #tpu.memory_space<vmem>>, vector<1x1x8x256xf32>
    %194 = vector.shape_cast %193 : vector<1x1x8x256xf32> to vector<8x256xf32>
    %c32 = arith.constant 32 : index
    %c0_189 = arith.constant 0 : index
    %c0_190 = arith.constant 0 : index
    %195 = vector.load %arg2[%c32, %c0_189, %c0_190] : memref<36x8x256xf32, #tpu.memory_space<vmem>>, vector<1x8x256xf32>
    %196 = vector.shape_cast %195 : vector<1x8x256xf32> to vector<8x256xf32>
    %197 = arith.mulf %196, %194 : vector<8x256xf32>
    %198 = arith.addf %192, %197 : vector<8x256xf32>
    %c0_191 = arith.constant 0 : index
    %c1_192 = arith.constant 1 : index
    %c0_193 = arith.constant 0 : index
    %c162_194 = arith.constant 162 : index
    %199 = vector.load %arg1[%c0_191, %c1_192, %c0_193, %c162_194] : memref<1x4x8x512xf32, #tpu.memory_space<vmem>>, vector<1x1x8x256xf32>
    %200 = vector.shape_cast %199 : vector<1x1x8x256xf32> to vector<8x256xf32>
    %c33 = arith.constant 33 : index
    %c0_195 = arith.constant 0 : index
    %c0_196 = arith.constant 0 : index
    %201 = vector.load %arg2[%c33, %c0_195, %c0_196] : memref<36x8x256xf32, #tpu.memory_space<vmem>>, vector<1x8x256xf32>
    %202 = vector.shape_cast %201 : vector<1x8x256xf32> to vector<8x256xf32>
    %203 = arith.mulf %202, %200 : vector<8x256xf32>
    %204 = arith.addf %198, %203 : vector<8x256xf32>
    %c0_197 = arith.constant 0 : index
    %c2_198 = arith.constant 2 : index
    %c0_199 = arith.constant 0 : index
    %c162_200 = arith.constant 162 : index
    %205 = vector.load %arg1[%c0_197, %c2_198, %c0_199, %c162_200] : memref<1x4x8x512xf32, #tpu.memory_space<vmem>>, vector<1x1x8x256xf32>
    %206 = vector.shape_cast %205 : vector<1x1x8x256xf32> to vector<8x256xf32>
    %c34 = arith.constant 34 : index
    %c0_201 = arith.constant 0 : index
    %c0_202 = arith.constant 0 : index
    %207 = vector.load %arg2[%c34, %c0_201, %c0_202] : memref<36x8x256xf32, #tpu.memory_space<vmem>>, vector<1x8x256xf32>
    %208 = vector.shape_cast %207 : vector<1x8x256xf32> to vector<8x256xf32>
    %209 = arith.mulf %208, %206 : vector<8x256xf32>
    %210 = arith.addf %204, %209 : vector<8x256xf32>
    %c0_203 = arith.constant 0 : index
    %c3_204 = arith.constant 3 : index
    %c0_205 = arith.constant 0 : index
    %c162_206 = arith.constant 162 : index
    %211 = vector.load %arg1[%c0_203, %c3_204, %c0_205, %c162_206] : memref<1x4x8x512xf32, #tpu.memory_space<vmem>>, vector<1x1x8x256xf32>
    %212 = vector.shape_cast %211 : vector<1x1x8x256xf32> to vector<8x256xf32>
    %c35 = arith.constant 35 : index
    %c0_207 = arith.constant 0 : index
    %c0_208 = arith.constant 0 : index
    %213 = vector.load %arg2[%c35, %c0_207, %c0_208] : memref<36x8x256xf32, #tpu.memory_space<vmem>>, vector<1x8x256xf32>
    %214 = vector.shape_cast %213 : vector<1x8x256xf32> to vector<8x256xf32>
    %215 = arith.mulf %214, %212 : vector<8x256xf32>
    %216 = arith.addf %210, %215 : vector<8x256xf32>
    %c0_209 = arith.constant 0 : index
    %c0_210 = arith.constant 0 : index
    %c0_211 = arith.constant 0 : index
    %217 = vector.load %arg4[%c0_209, %c0_210, %c0_211] : memref<1x8x256xf32, #tpu.memory_space<vmem>>, vector<1x8x256xf32>
    %218 = vector.shape_cast %217 : vector<1x8x256xf32> to vector<8x256xf32>
    %219 = vector.shape_cast %216 : vector<8x256xf32> to vector<1x8x256xf32>
    tpu.vector_store %arg4[%c0_209, %c0_210, %c0_211], %219 {strides = array<i32>} : memref<1x8x256xf32, #tpu.memory_space<vmem>>, vector<1x8x256xf32>,
    return
  }
  func.func @transform_0(%arg0: i32) -> (i32, i32, i32, i32) {
    %c0_i32 = arith.constant 0 : i32
    %c0_i32_0 = arith.constant 0 : i32
    %c0_i32_1 = arith.constant 0 : i32
    %c0_i32_2 = arith.constant 0 : i32
    return %arg0, %c0_i32, %c0_i32_0, %c0_i32_1 : i32, i32, i32, i32
  }
  func.func @transform_1(%arg0: i32) -> (i32, i32, i32) {
    %c0_i32 = arith.constant 0 : i32
    %c0_i32_0 = arith.constant 0 : i32
    %c0_i32_1 = arith.constant 0 : i32
    %c0_i32_2 = arith.constant 0 : i32
    return %c0_i32, %c0_i32_0, %c0_i32_1 : i32, i32, i32
  }
  func.func @transform_2(%arg0: i32) -> (i32, i32) {
    %c0_i32 = arith.constant 0 : i32
    %c0_i32_0 = arith.constant 0 : i32
    %c0_i32_1 = arith.constant 0 : i32
    return %c0_i32, %c0_i32_0 : i32, i32
  }
  func.func @transform_3(%arg0: i32) -> (i32, i32, i32) {
    %c0_i32 = arith.constant 0 : i32
    %c0_i32_0 = arith.constant 0 : i32
    %c0_i32_1 = arith.constant 0 : i32
    return %arg0, %c0_i32, %c0_i32_0 : i32, i32, i32
  }
}

</mosaic_0001>

<llo_original>
// kernel: csdn_temd_forward.1
$region0: #{csdn_temd_forward.1}
  #allocation0 [shape = 'u32[]', space=smem, size = 0x4, offset = 0x4, fixed_abs, tag = 'smem constant byte address 0x4 - core index']
  #allocation1 [shape = 'u32[144,128]{1,0:T(1,128)}', space=vmem, size = 0x12000, scoped, tag = 'internal scratch']
  %s0 = inlined_call_operand.vmem [shape: f32[2,4,8,512], index: 0, kind: input, shape index: {}]
  %s1 = inlined_call_operand.vmem [shape: f32[36,8,256], index: 1, kind: input, shape index: {}]
  %s2 = inlined_call_operand.vmem [shape: f32[8,256], index: 2, kind: input, shape index: {}]
  %s3 = inlined_call_operand.vmem [shape: f32[2,8,256], index: 3, kind: output, shape index: {}]
  %s4 = sld [smem:[#allocation0]]
  $region45: #{csdn_temd_forward.1} parent=0
    _
  %s6 = ssub.s32 1, %s4
  %s7 = scalar_select 0, %s6, %s4
  loop: start=0, step=1, limit=4
  $region2: #{csdn_temd_forward.1} parent=0 // loop_pre_header
    _
  $region3: #{csdn_temd_forward.1} parent=0 // loop_header
    %s9 = sphi 0, %s13
    %p10 = scmp.ge.s32.totalorder %s9, 4
    %s19 = sphi 0, %s21
    %s22 = sphi 0, %s19
    %s23 = sphi 0, %s22
    %s39 = sphi 0, %s23
    %s43 = sphi 0, %s43
    %s45 = sphi 0, %s43
    %s46 = sphi 0, %s45
    %s60 = sphi 0, %s46
    %s64 = sphi 0, %s64
    %s66 = sphi 0, %s64
    %s67 = sphi 0, %s66
    %s81 = sphi 0, %s67
    %s87 = sphi 0, %s89
    %s90 = sphi 0, %s87
    %s91 = sphi 0, %s90
    %s107 = sphi 0, %s91
  $region4: #{csdn_temd_forward.1} parent=0 // loop_header_branch
    %12 = sbr.rel (%p10) target = $region8
  $region5: #{csdn_temd_forward.1} parent=0 // loop_body
    %s14 = ssub.s32 %s9, 1
    %s15 = ssub.s32 %s9, 2
    %s16 = sadd.s32 %s9, 1
    %s17 = ssub.s32 %s9, %s16
    %p18 = scmp.eq.s32.totalorder %s17, 0
    %s20 = sadd.s32 %s19, 1
    %s21 = scalar_select %p18, %s19, %s20
    %p24 = pneg %p18
    %p25 = scmp.eq.s32.totalorder %s9, 1
    %p26 = por %p24, %p25
    %p27 = scmp.ne.s32.totalorder %s19, %s22
    %p28 = scmp.eq.s32.totalorder %s9, 0
    %p29 = por %p27, %p28
    %p30 = scmp.ne.s32.totalorder %s19, %s22
    %p31 = scmp.eq.s32.totalorder %s14, 1
    %p32 = por %p30, %p31
    %p33 = scmp.ne.s32.totalorder %s22, %s23
    %p34 = scmp.eq.s32.totalorder %s14, 0
    %p35 = por %p33, %p34
    %p36 = scmp.ne.s32.totalorder %s22, %s23
    %p37 = scmp.eq.s32.totalorder %s15, 1
    %p38 = por %p36, %p37
    %p40 = scmp.ne.s32.totalorder %s23, %s39
    %p41 = scmp.eq.s32.totalorder %s15, 0
    %p42 = por %p40, %p41
    %s44 = sadd.s32 %s43, 1
    %p47 = scmp.eq.s32.totalorder %s9, 1
    %p48 = scmp.ne.s32.totalorder %s43, %s45
    %p49 = scmp.eq.s32.totalorder %s9, 0
    %p50 = por %p48, %p49
    %p51 = scmp.ne.s32.totalorder %s43, %s45
    %p52 = scmp.eq.s32.totalorder %s14, 1
    %p53 = por %p51, %p52
    %p54 = scmp.ne.s32.totalorder %s45, %s46
    %p55 = scmp.eq.s32.totalorder %s14, 0
    %p56 = por %p54, %p55
    %p57 = scmp.ne.s32.totalorder %s45, %s46
    %p58 = scmp.eq.s32.totalorder %s15, 1
    %p59 = por %p57, %p58
    %p61 = scmp.ne.s32.totalorder %s46, %s60
    %p62 = scmp.eq.s32.totalorder %s15, 0
    %p63 = por %p61, %p62
    %s65 = sadd.s32 %s64, 1
    %p68 = scmp.eq.s32.totalorder %s9, 1
    %p69 = scmp.ne.s32.totalorder %s64, %s66
    %p70 = scmp.eq.s32.totalorder %s9, 0
    %p71 = por %p69, %p70
    %p72 = scmp.ne.s32.totalorder %s64, %s66
    %p73 = scmp.eq.s32.totalorder %s14, 1
    %p74 = por %p72, %p73
    %p75 = scmp.ne.s32.totalorder %s66, %s67
    %p76 = scmp.eq.s32.totalorder %s14, 0
    %p77 = por %p75, %p76
    %p78 = scmp.ne.s32.totalorder %s66, %s67
    %p79 = scmp.eq.s32.totalorder %s15, 1
    %p80 = por %p78, %p79
    %p82 = scmp.ne.s32.totalorder %s67, %s81
    %p83 = scmp.eq.s32.totalorder %s15, 0
    %p84 = por %p82, %p83
    %s85 = ssub.s32 %s9, %s16
    %p86 = scmp.eq.s32.totalorder %s85, 0
    %s88 = sadd.s32 %s87, 1
    %s89 = scalar_select %p86, %s87, %s88
    %p92 = pneg %p86
    %p93 = scmp.eq.s32.totalorder %s9, 1
    %p94 = por %p92, %p93
    %p95 = scmp.ne.s32.totalorder %s87, %s90
    %p96 = scmp.eq.s32.totalorder %s9, 0
    %p97 = por %p95, %p96
    %p98 = scmp.ne.s32.totalorder %s87, %s90
    %p99 = scmp.eq.s32.totalorder %s14, 1
    %p100 = por %p98, %p99
    %p101 = scmp.ne.s32.totalorder %s90, %s91
    %p102 = scmp.eq.s32.totalorder %s14, 0
    %p103 = por %p101, %p102
    %p104 = scmp.ne.s32.totalorder %s90, %s91
    %p105 = scmp.eq.s32.totalorder %s15, 1
    %p106 = por %p104, %p105
    %p108 = scmp.ne.s32.totalorder %s91, %s107
    %p109 = scmp.eq.s32.totalorder %s15, 0
    %p110 = por %p108, %p109
    %p111 = scmp.le.s32.totalorder 1, %s9
    %p112 = scmp.lt.s32.totalorder %s9, 3
    %p113 = pnand %p111, %p112
    %p114 = pneg %p113
    // Predicated region
    $region9: #{csdn_temd_forward.1} parent=5 // pred_check
      _
    $region10: #{csdn_temd_forward.1} parent=5 // pred_check_branch
      %116 = sbr.rel (%p113) target = $region12
    $region11: #{csdn_temd_forward.1} parent=5 // pred_region
      %s117 = ssub.s32 %s9, 1
      // Predicated region
      $region13: #{csdn_temd_forward.1} parent=11 // pred_check
        %p118 = pneg %p56
      $region14: #{csdn_temd_forward.1} parent=11 // pred_check_branch
        %120 = sbr.rel (%p118) target = $region16
      $region15: #{csdn_temd_forward.1} parent=11 // pred_region
        _
      $region16: #{csdn_temd_forward.1} parent=11 // pred_fallthru
        _
      // Predicated region
      $region17: #{csdn_temd_forward.1} parent=11 // pred_check
        %p121 = pneg %p77
      $region18: #{csdn_temd_forward.1} parent=11 // pred_check_branch
        %123 = sbr.rel (%p121) target = $region20
      $region19: #{csdn_temd_forward.1} parent=11 // pred_region
        _
      $region20: #{csdn_temd_forward.1} parent=11 // pred_fallthru
        _
    $region12: #{csdn_temd_forward.1} parent=5 // pred_fallthru
      _
    %p124 = scmp.lt.s32.totalorder %s9, 2
    // Predicated region
    $region21: #{csdn_temd_forward.1} parent=5 // pred_check
      %p125 = pneg %p124
    $region22: #{csdn_temd_forward.1} parent=5 // pred_check_branch
      %127 = sbr.rel (%p125) target = $region24
    $region23: #{csdn_temd_forward.1} parent=5 // pred_region
      // Predicated region
      $region25: #{csdn_temd_forward.1} parent=23 // pred_check
        %p128 = pneg %p29
      $region26: #{csdn_temd_forward.1} parent=23 // pred_check_branch
        %130 = sbr.rel (%p128) target = $region28
      $region27: #{csdn_temd_forward.1} parent=23 // pred_region
        %p131 = scmp.lt.s32.totalorder %s9, 1
        %s132 = scalar_select %p131, %s9, 1
        %s133 = smul.addr %s132, 16
        %s134 = smul.addr %s133, 8
        %s135 = scalar_lea.vmem %s0, %s134
      $region28: #{csdn_temd_forward.1} parent=23 // pred_fallthru
        _
    $region24: #{csdn_temd_forward.1} parent=5 // pred_fallthru
      _
    %p136 = scmp.le.s32.totalorder 1, %s9
    %p137 = scmp.lt.s32.totalorder %s9, 3
    %p138 = pnand %p136, %p137
    %p139 = pneg %p138
    // Predicated region
    $region29: #{csdn_temd_forward.1} parent=5 // pred_check
      _
    $region30: #{csdn_temd_forward.1} parent=5 // pred_check_branch
      %141 = sbr.rel (%p138) target = $region32
    $region31: #{csdn_temd_forward.1} parent=5 // pred_region
      %s142 = ssub.s32 %s9, 1
      %p143 = scmp.lt.s32.totalorder %s14, 1
      %s144 = scalar_select %p143, %s14, 1
      %s145 = smul.addr %s144, 16
      %s146 = smul.addr %s145, 8
      %s147 = scalar_lea.vmem %s0, %s146
      %p148 = pneg %p35
      %p149 = pneg %p32
      %p150 = pneg %p56
      %p151 = pneg %p53
      %p152 = pneg %p77
      %p153 = pneg %p74
      %p154 = pneg %p103
      %p155 = pneg %p100
      %p156 = scmp.lt.s32.totalorder %s14, 1
      %s157 = scalar_select %p156, %s14, 1
      %s158 = smul.addr %s157, 2
      %s159 = smul.addr %s158, 8
      %s160 = scalar_lea.vmem %s3, %s159
      %p161 = scmp.lt.s32.totalorder %s14, 1
      %s162 = scalar_select %p161, %s14, 1
      %s163 = smul.addr %s162, 16
      %s164 = smul.addr %s163, 8
      %s165 = scalar_lea.vmem %s0, %s164
      %p166 = scmp.lt.s32.totalorder %s14, 1
      %s167 = scalar_select %p166, %s14, 1
      %s168 = smul.addr %s167, 2
      %s169 = smul.addr %s168, 8
      %s170 = scalar_lea.vmem %s3, %s169
      %v171 = vld [vmem:[%s2] sm:$0xff]
      %v172 = vld [vmem:[%s2 + $0x8] sm:$0xff]
      %v173 = vld [vmem:[%s165] sm:$0xff]
      %v174 = vld [vmem:[%s165 + $0x8] sm:$0xff]
      %v175 = vld [vmem:[%s165 + $0x10] sm:$0xff]
      %v176 = vld [vmem:[%s1] sm:$0xff]
      %v177 = vld [vmem:[%s1 + $0x8] sm:$0xff]
      %181 = vrot.lane.b32.xlu0 %v173, 34
      %v182 = vpop.permute.xlu0 %181
      %183 = vrot.lane.b32.xlu0 %v174, 34
      %v184 = vpop.permute.xlu0 %183
      %185 = vrot.lane.b32.xlu0 %v175, 34
      %v186 = vpop.permute.xlu0 %185
      %vm187 = vcmask 277504
      %v188 = vsel %vm187, %v182, %v184
      %v189 = vsel %vm187, %v184, %v186
      %v192 = vmul.f32 %v176, %v188
      %v193 = vmul.f32 %v177, %v189
      %v194 = vadd.f32 %v171, %v192
      %v195 = vadd.f32 %v172, %v193
      %s196 = scalar_lea.vmem %s165, 32
      %v197 = vld [vmem:[%s196] sm:$0xff]
      %v198 = vld [vmem:[%s196 + $0x8] sm:$0xff]
      %v199 = vld [vmem:[%s196 + $0x10] sm:$0xff]
      %s200 = scalar_lea.vmem %s1, 16
      %v201 = vld [vmem:[%s200] sm:$0xff]
      %v202 = vld [vmem:[%s200 + $0x8] sm:$0xff]
      %206 = vrot.lane.b32.xlu0 %v197, 34
      %v207 = vpop.permute.xlu0 %206
      %208 = vrot.lane.b32.xlu0 %v198, 34
      %v209 = vpop.permute.xlu0 %208
      %210 = vrot.lane.b32.xlu0 %v199, 34
      %v211 = vpop.permute.xlu0 %210
      %v212 = vsel %vm187, %v207, %v209
      %v213 = vsel %vm187, %v209, %v211
      %v216 = vmul.f32 %v201, %v212
      %v217 = vmul.f32 %v202, %v213
      %v218 = vadd.f32 %v194, %v216
      %v219 = vadd.f32 %v195, %v217
      %s220 = scalar_lea.vmem %s165, 64
      %v221 = vld [vmem:[%s220] sm:$0xff]
      %v222 = vld [vmem:[%s220 + $0x8] sm:$0xff]
      %v223 = vld [vmem:[%s220 + $0x10] sm:$0xff]
      %s224 = scalar_lea.vmem %s1, 32
      %v225 = vld [vmem:[%s224] sm:$0xff]
      %v226 = vld [vmem:[%s224 + $0x8] sm:$0xff]
      %230 = vrot.lane.b32.xlu0 %v221, 34
      %v231 = vpop.permute.xlu0 %230
      %232 = vrot.lane.b32.xlu0 %v222, 34
      %v233 = vpop.permute.xlu0 %232
      %234 = vrot.lane.b32.xlu0 %v223, 34
      %v235 = vpop.permute.xlu0 %234
      %v236 = vsel %vm187, %v231, %v233
      %v237 = vsel %vm187, %v233, %v235
      %v240 = vmul.f32 %v225, %v236
      %v241 = vmul.f32 %v226, %v237
      %v242 = vadd.f32 %v218, %v240
      %v243 = vadd.f32 %v219, %v241
      %s244 = scalar_lea.vmem %s165, 96
      %v245 = vld [vmem:[%s244] sm:$0xff]
      %v246 = vld [vmem:[%s244 + $0x8] sm:$0xff]
      %v247 = vld [vmem:[%s244 + $0x10] sm:$0xff]
      %s248 = scalar_lea.vmem %s1, 48
      %v249 = vld [vmem:[%s248] sm:$0xff]
      %v250 = vld [vmem:[%s248 + $0x8] sm:$0xff]
      %254 = vrot.lane.b32.xlu0 %v245, 34
      %v255 = vpop.permute.xlu0 %254
      %256 = vrot.lane.b32.xlu0 %v246, 34
      %v257 = vpop.permute.xlu0 %256
      %258 = vrot.lane.b32.xlu0 %v247, 34
      %v259 = vpop.permute.xlu0 %258
      %v260 = vsel %vm187, %v255, %v257
      %v261 = vsel %vm187, %v257, %v259
      %v264 = vmul.f32 %v249, %v260
      %v265 = vmul.f32 %v250, %v261
      %v266 = vadd.f32 %v242, %v264
      %v267 = vadd.f32 %v243, %v265
      %s268 = scalar_lea.vmem %s1, 64
      %v269 = vld [vmem:[%s268] sm:$0xff]
      %v270 = vld [vmem:[%s268 + $0x8] sm:$0xff]
      %271 = vrot.lane.b32.xlu0 %v173, 32
      %v272 = vpop.permute.xlu0 %271
      %273 = vrot.lane.b32.xlu0 %v174, 32
      %v274 = vpop.permute.xlu0 %273
      %275 = vrot.lane.b32.xlu0 %v175, 32
      %v276 = vpop.permute.xlu0 %275
      %vm277 = vcmask 261120
      %v278 = vsel %vm277, %v272, %v274
      %v279 = vsel %vm277, %v274, %v276
      %v282 = vmul.f32 %v269, %v278
      %v283 = vmul.f32 %v270, %v279
      %v284 = vadd.f32 %v266, %v282
      %v285 = vadd.f32 %v267, %v283
      %s286 = scalar_lea.vmem %s1, 80
      %v287 = vld [vmem:[%s286] sm:$0xff]
      %v288 = vld [vmem:[%s286 + $0x8] sm:$0xff]
      %289 = vrot.lane.b32.xlu0 %v197, 32
      %v290 = vpop.permute.xlu0 %289
      %291 = vrot.lane.b32.xlu0 %v198, 32
      %v292 = vpop.permute.xlu0 %291
      %293 = vrot.lane.b32.xlu0 %v199, 32
      %v294 = vpop.permute.xlu0 %293
      %v295 = vsel %vm277, %v290, %v292
      %v296 = vsel %vm277, %v292, %v294
      %v299 = vmul.f32 %v287, %v295
      %v300 = vmul.f32 %v288, %v296
      %v301 = vadd.f32 %v284, %v299
      %v302 = vadd.f32 %v285, %v300
      %s303 = scalar_lea.vmem %s1, 96
      %v304 = vld [vmem:[%s303] sm:$0xff]
      %v305 = vld [vmem:[%s303 + $0x8] sm:$0xff]
      %306 = vrot.lane.b32.xlu0 %v221, 32
      %v307 = vpop.permute.xlu0 %306
      %308 = vrot.lane.b32.xlu0 %v222, 32
      %v309 = vpop.permute.xlu0 %308
      %310 = vrot.lane.b32.xlu0 %v223, 32
      %v311 = vpop.permute.xlu0 %310
      %v312 = vsel %vm277, %v307, %v309
      %v313 = vsel %vm277, %v309, %v311
      %v316 = vmul.f32 %v304, %v312
      %v317 = vmul.f32 %v305, %v313
      %v318 = vadd.f32 %v301, %v316
      %v319 = vadd.f32 %v302, %v317
      %s320 = scalar_lea.vmem %s1, 112
      %v321 = vld [vmem:[%s320] sm:$0xff]
      %v322 = vld [vmem:[%s320 + $0x8] sm:$0xff]
      %323 = vrot.lane.b32.xlu0 %v245, 32
      %v324 = vpop.permute.xlu0 %323
      %325 = vrot.lane.b32.xlu0 %v246, 32
      %v326 = vpop.permute.xlu0 %325
      %327 = vrot.lane.b32.xlu0 %v247, 32
      %v328 = vpop.permute.xlu0 %327
      %v329 = vsel %vm277, %v324, %v326
      %v330 = vsel %vm277, %v326, %v328
      %v333 = vmul.f32 %v321, %v329
      %v334 = vmul.f32 %v322, %v330
      %v335 = vadd.f32 %v318, %v333
      %v336 = vadd.f32 %v319, %v334
      %s337 = scalar_lea.vmem %s1, 128
      %v338 = vld [vmem:[%s337] sm:$0xff]
      %v339 = vld [vmem:[%s337 + $0x8] sm:$0xff]
      %340 = vrot.lane.b32.xlu0 %v173, 30
      %v341 = vpop.permute.xlu0 %340
      %342 = vrot.lane.b32.xlu0 %v174, 30
      %v343 = vpop.permute.xlu0 %342
      %344 = vrot.lane.b32.xlu0 %v175, 30
      %v345 = vpop.permute.xlu0 %344
      %vm346 = vcmask 244736
      %v347 = vsel %vm346, %v341, %v343
      %v348 = vsel %vm346, %v343, %v345
      %v351 = vmul.f32 %v338, %v347
      %v352 = vmul.f32 %v339, %v348
      %v353 = vadd.f32 %v335, %v351
      %v354 = vadd.f32 %v336, %v352
      %s355 = scalar_lea.vmem %s1, 144
      %v356 = vld [vmem:[%s355] sm:$0xff]
      %v357 = vld [vmem:[%s355 + $0x8] sm:$0xff]
      %358 = vrot.lane.b32.xlu0 %v197, 30
      %v359 = vpop.permute.xlu0 %358
      %360 = vrot.lane.b32.xlu0 %v198, 30
      %v361 = vpop.permute.xlu0 %360
      %362 = vrot.lane.b32.xlu0 %v199, 30
      %v363 = vpop.permute.xlu0 %362
      %v364 = vsel %vm346, %v359, %v361
      %v365 = vsel %vm346, %v361, %v363
      %v368 = vmul.f32 %v356, %v364
      %v369 = vmul.f32 %v357, %v365
      %v370 = vadd.f32 %v353, %v368
      %v371 = vadd.f32 %v354, %v369
      %s372 = scalar_lea.vmem %s1, 160
      %v373 = vld [vmem:[%s372] sm:$0xff]
      %v374 = vld [vmem:[%s372 + $0x8] sm:$0xff]
      %375 = vrot.lane.b32.xlu0 %v221, 30
      %v376 = vpop.permute.xlu0 %375
      %377 = vrot.lane.b32.xlu0 %v222, 30
      %v378 = vpop.permute.xlu0 %377
      %379 = vrot.lane.b32.xlu0 %v223, 30
      %v380 = vpop.permute.xlu0 %379
      %v381 = vsel %vm346, %v376, %v378
      %v382 = vsel %vm346, %v378, %v380
      %v385 = vmul.f32 %v373, %v381
      %v386 = vmul.f32 %v374, %v382
      %v387 = vadd.f32 %v370, %v385
      %v388 = vadd.f32 %v371, %v386
      %s389 = scalar_lea.vmem %s1, 176
      %v390 = vld [vmem:[%s389] sm:$0xff]
      %v391 = vld [vmem:[%s389 + $0x8] sm:$0xff]
      %392 = vrot.lane.b32.xlu0 %v245, 30
      %v393 = vpop.permute.xlu0 %392
      %394 = vrot.lane.b32.xlu0 %v246, 30
      %v395 = vpop.permute.xlu0 %394
      %396 = vrot.lane.b32.xlu0 %v247, 30
      %v397 = vpop.permute.xlu0 %396
      %v398 = vsel %vm346, %v393, %v395
      %v399 = vsel %vm346, %v395, %v397
      %v402 = vmul.f32 %v390, %v398
      %v403 = vmul.f32 %v391, %v399
      %v404 = vadd.f32 %v387, %v402
      %v405 = vadd.f32 %v388, %v403
      %s406 = scalar_lea.vmem %s1, 192
      %v407 = vld [vmem:[%s406] sm:$0xff]
      %v408 = vld [vmem:[%s406 + $0x8] sm:$0xff]
      %409 = vrot.lane.b32.xlu0 %v173, 2
      %v410 = vpop.permute.xlu0 %409
      %411 = vrot.lane.b32.xlu0 %v174, 2
      %v412 = vpop.permute.xlu0 %411
      %413 = vrot.lane.b32.xlu0 %v175, 2
      %v414 = vpop.permute.xlu0 %413
      %vm415 = vcmask 15360
      %v416 = vsel %vm415, %v410, %v412
      %v417 = vsel %vm415, %v412, %v414
      %v420 = vmul.f32 %v407, %v416
      %v421 = vmul.f32 %v408, %v417
      %v422 = vadd.f32 %v404, %v420
      %v423 = vadd.f32 %v405, %v421
      %s424 = scalar_lea.vmem %s1, 208
      %v425 = vld [vmem:[%s424] sm:$0xff]
      %v426 = vld [vmem:[%s424 + $0x8] sm:$0xff]
      %427 = vrot.lane.b32.xlu0 %v197, 2
      %v428 = vpop.permute.xlu0 %427
      %429 = vrot.lane.b32.xlu0 %v198, 2
      %v430 = vpop.permute.xlu0 %429
      %431 = vrot.lane.b32.xlu0 %v199, 2
      %v432 = vpop.permute.xlu0 %431
      %v433 = vsel %vm415, %v428, %v430
      %v434 = vsel %vm415, %v430, %v432
      %v437 = vmul.f32 %v425, %v433
      %v438 = vmul.f32 %v426, %v434
      %v439 = vadd.f32 %v422, %v437
      %v440 = vadd.f32 %v423, %v438
      %s441 = scalar_lea.vmem %s1, 224
      %v442 = vld [vmem:[%s441] sm:$0xff]
      %v443 = vld [vmem:[%s441 + $0x8] sm:$0xff]
      %444 = vrot.lane.b32.xlu0 %v221, 2
      %v445 = vpop.permute.xlu0 %444
      %446 = vrot.lane.b32.xlu0 %v222, 2
      %v447 = vpop.permute.xlu0 %446
      %448 = vrot.lane.b32.xlu0 %v223, 2
      %v449 = vpop.permute.xlu0 %448
      %v450 = vsel %vm415, %v445, %v447
      %v451 = vsel %vm415, %v447, %v449
      %v454 = vmul.f32 %v442, %v450
      %v455 = vmul.f32 %v443, %v451
      %v456 = vadd.f32 %v439, %v454
      %v457 = vadd.f32 %v440, %v455
      %s458 = scalar_lea.vmem %s1, 240
      %v459 = vld [vmem:[%s458] sm:$0xff]
      %v460 = vld [vmem:[%s458 + $0x8] sm:$0xff]
      %461 = vrot.lane.b32.xlu0 %v245, 2
      %v462 = vpop.permute.xlu0 %461
      %463 = vrot.lane.b32.xlu0 %v246, 2
      %v464 = vpop.permute.xlu0 %463
      %465 = vrot.lane.b32.xlu0 %v247, 2
      %v466 = vpop.permute.xlu0 %465
      %v467 = vsel %vm415, %v462, %v464
      %v468 = vsel %vm415, %v464, %v466
      %v471 = vmul.f32 %v459, %v467
      %v472 = vmul.f32 %v460, %v468
      %v473 = vadd.f32 %v456, %v471
      %v474 = vadd.f32 %v457, %v472
      %s475 = scalar_lea.vmem %s1, 256
      %v476 = vld [vmem:[%s475] sm:$0xff]
      %v477 = vld [vmem:[%s475 + $0x8] sm:$0xff]
      %v478 = vmul.f32 %v476, %v174
      %v479 = vmul.f32 %v477, %v175
      %v480 = vadd.f32 %v473, %v478
      %v481 = vadd.f32 %v474, %v479
      %s482 = scalar_lea.vmem %s1, 272
      %v483 = vld [vmem:[%s482] sm:$0xff]
      %v484 = vld [vmem:[%s482 + $0x8] sm:$0xff]
      %v485 = vmul.f32 %v483, %v198
      %v486 = vmul.f32 %v484, %v199
      %v487 = vadd.f32 %v480, %v485
      %v488 = vadd.f32 %v481, %v486
      %s489 = scalar_lea.vmem %s1, 288
      %v490 = vld [vmem:[%s489] sm:$0xff]
      %v491 = vld [vmem:[%s489 + $0x8] sm:$0xff]
      %v492 = vmul.f32 %v490, %v222
      %v493 = vmul.f32 %v491, %v223
      %v494 = vadd.f32 %v487, %v492
      %v495 = vadd.f32 %v488, %v493
      %s496 = scalar_lea.vmem %s1, 304
      %v497 = vld [vmem:[%s496] sm:$0xff]
      %v498 = vld [vmem:[%s496 + $0x8] sm:$0xff]
      %v499 = vmul.f32 %v497, %v246
      %v500 = vmul.f32 %v498, %v247
      %v501 = vadd.f32 %v494, %v499
      %v502 = vadd.f32 %v495, %v500
      %v503 = vld [vmem:[%s165 + $0x18] sm:$0xff]
      %s504 = scalar_lea.vmem %s1, 320
      %v505 = vld [vmem:[%s504] sm:$0xff]
      %v506 = vld [vmem:[%s504 + $0x8] sm:$0xff]
      %508 = vrot.lane.b32.xlu0 %v174, 126
      %v509 = vpop.permute.xlu0 %508
      %510 = vrot.lane.b32.xlu0 %v175, 126
      %v511 = vpop.permute.xlu0 %510
      %512 = vrot.lane.b32.xlu0 %v503, 126
      %v513 = vpop.permute.xlu0 %512
      %vm514 = vcmask 1031168
      %v515 = vsel %vm514, %v509, %v511
      %v516 = vsel %vm514, %v511, %v513
      %v519 = vmul.f32 %v505, %v515
      %v520 = vmul.f32 %v506, %v516
      %v521 = vadd.f32 %v501, %v519
      %v522 = vadd.f32 %v502, %v520
      %v523 = vld [vmem:[%s196 + $0x18] sm:$0xff]
      %s524 = scalar_lea.vmem %s1, 336
      %v525 = vld [vmem:[%s524] sm:$0xff]
      %v526 = vld [vmem:[%s524 + $0x8] sm:$0xff]
      %528 = vrot.lane.b32.xlu0 %v198, 126
      %v529 = vpop.permute.xlu0 %528
      %530 = vrot.lane.b32.xlu0 %v199, 126
      %v531 = vpop.permute.xlu0 %530
      %532 = vrot.lane.b32.xlu0 %v523, 126
      %v533 = vpop.permute.xlu0 %532
      %v534 = vsel %vm514, %v529, %v531
      %v535 = vsel %vm514, %v531, %v533
      %v538 = vmul.f32 %v525, %v534
      %v539 = vmul.f32 %v526, %v535
      %v540 = vadd.f32 %v521, %v538
      %v541 = vadd.f32 %v522, %v539
      %v542 = vld [vmem:[%s220 + $0x18] sm:$0xff]
      %s543 = scalar_lea.vmem %s1, 352
      %v544 = vld [vmem:[%s543] sm:$0xff]
      %v545 = vld [vmem:[%s543 + $0x8] sm:$0xff]
      %547 = vrot.lane.b32.xlu0 %v222, 126
      %v548 = vpop.permute.xlu0 %547
      %549 = vrot.lane.b32.xlu0 %v223, 126
      %v550 = vpop.permute.xlu0 %549
      %551 = vrot.lane.b32.xlu0 %v542, 126
      %v552 = vpop.permute.xlu0 %551
      %v553 = vsel %vm514, %v548, %v550
      %v554 = vsel %vm514, %v550, %v552
      %v557 = vmul.f32 %v544, %v553
      %v558 = vmul.f32 %v545, %v554
      %v559 = vadd.f32 %v540, %v557
      %v560 = vadd.f32 %v541, %v558
      %v561 = vld [vmem:[%s244 + $0x18] sm:$0xff]
      %s562 = scalar_lea.vmem %s1, 368
      %v563 = vld [vmem:[%s562] sm:$0xff]
      %v564 = vld [vmem:[%s562 + $0x8] sm:$0xff]
      %566 = vrot.lane.b32.xlu0 %v246, 126
      %v567 = vpop.permute.xlu0 %566
      %568 = vrot.lane.b32.xlu0 %v247, 126
      %v569 = vpop.permute.xlu0 %568
      %570 = vrot.lane.b32.xlu0 %v561, 126
      %v571 = vpop.permute.xlu0 %570
      %v572 = vsel %vm514, %v567, %v569
      %v573 = vsel %vm514, %v569, %v571
      %v576 = vmul.f32 %v563, %v572
      %v577 = vmul.f32 %v564, %v573
      %v578 = vadd.f32 %v559, %v576
      %v579 = vadd.f32 %v560, %v577
      %s580 = scalar_lea.vmem %s1, 384
      %v581 = vld [vmem:[%s580] sm:$0xff]
      %v582 = vld [vmem:[%s580 + $0x8] sm:$0xff]
      %583 = vrot.lane.b32.xlu0 %v174, 98
      %v584 = vpop.permute.xlu0 %583
      %585 = vrot.lane.b32.xlu0 %v175, 98
      %v586 = vpop.permute.xlu0 %585
      %587 = vrot.lane.b32.xlu0 %v503, 98
      %v588 = vpop.permute.xlu0 %587
      %vm589 = vcmask 801792
      %v590 = vsel %vm589, %v584, %v586
      %v591 = vsel %vm589, %v586, %v588
      %v594 = vmul.f32 %v581, %v590
      %v595 = vmul.f32 %v582, %v591
      %v596 = vadd.f32 %v578, %v594
      %v597 = vadd.f32 %v579, %v595
      %s598 = scalar_lea.vmem %s1, 400
      %v599 = vld [vmem:[%s598] sm:$0xff]
      %v600 = vld [vmem:[%s598 + $0x8] sm:$0xff]
      %601 = vrot.lane.b32.xlu0 %v198, 98
      %v602 = vpop.permute.xlu0 %601
      %603 = vrot.lane.b32.xlu0 %v199, 98
      %v604 = vpop.permute.xlu0 %603
      %605 = vrot.lane.b32.xlu0 %v523, 98
      %v606 = vpop.permute.xlu0 %605
      %v607 = vsel %vm589, %v602, %v604
      %v608 = vsel %vm589, %v604, %v606
      %v611 = vmul.f32 %v599, %v607
      %v612 = vmul.f32 %v600, %v608
      %v613 = vadd.f32 %v596, %v611
      %v614 = vadd.f32 %v597, %v612
      %s615 = scalar_lea.vmem %s1, 416
      %v616 = vld [vmem:[%s615] sm:$0xff]
      %v617 = vld [vmem:[%s615 + $0x8] sm:$0xff]
      %618 = vrot.lane.b32.xlu0 %v222, 98
      %v619 = vpop.permute.xlu0 %618
      %620 = vrot.lane.b32.xlu0 %v223, 98
      %v621 = vpop.permute.xlu0 %620
      %622 = vrot.lane.b32.xlu0 %v542, 98
      %v623 = vpop.permute.xlu0 %622
      %v624 = vsel %vm589, %v619, %v621
      %v625 = vsel %vm589, %v621, %v623
      %v628 = vmul.f32 %v616, %v624
      %v629 = vmul.f32 %v617, %v625
      %v630 = vadd.f32 %v613, %v628
      %v631 = vadd.f32 %v614, %v629
      %s632 = scalar_lea.vmem %s1, 432
      %v633 = vld [vmem:[%s632] sm:$0xff]
      %v634 = vld [vmem:[%s632 + $0x8] sm:$0xff]
      %635 = vrot.lane.b32.xlu0 %v246, 98
      %v636 = vpop.permute.xlu0 %635
      %637 = vrot.lane.b32.xlu0 %v247, 98
      %v638 = vpop.permute.xlu0 %637
      %639 = vrot.lane.b32.xlu0 %v561, 98
      %v640 = vpop.permute.xlu0 %639
      %v641 = vsel %vm589, %v636, %v638
      %v642 = vsel %vm589, %v638, %v640
      %v645 = vmul.f32 %v633, %v641
      %v646 = vmul.f32 %v634, %v642
      %v647 = vadd.f32 %v630, %v645
      %v648 = vadd.f32 %v631, %v646
      %s649 = scalar_lea.vmem %s1, 448
      %v650 = vld [vmem:[%s649] sm:$0xff]
      %v651 = vld [vmem:[%s649 + $0x8] sm:$0xff]
      %652 = vrot.lane.b32.xlu0 %v174, 96
      %v653 = vpop.permute.xlu0 %652
      %654 = vrot.lane.b32.xlu0 %v175, 96
      %v655 = vpop.permute.xlu0 %654
      %656 = vrot.lane.b32.xlu0 %v503, 96
      %v657 = vpop.permute.xlu0 %656
      %vm658 = vcmask 785408
      %v659 = vsel %vm658, %v653, %v655
      %v660 = vsel %vm658, %v655, %v657
      %v663 = vmul.f32 %v650, %v659
      %v664 = vmul.f32 %v651, %v660
      %v665 = vadd.f32 %v647, %v663
      %v666 = vadd.f32 %v648, %v664
      %s667 = scalar_lea.vmem %s1, 464
      %v668 = vld [vmem:[%s667] sm:$0xff]
      %v669 = vld [vmem:[%s667 + $0x8] sm:$0xff]
      %670 = vrot.lane.b32.xlu0 %v198, 96
      %v671 = vpop.permute.xlu0 %670
      %672 = vrot.lane.b32.xlu0 %v199, 96
      %v673 = vpop.permute.xlu0 %672
      %674 = vrot.lane.b32.xlu0 %v523, 96
      %v675 = vpop.permute.xlu0 %674
      %v676 = vsel %vm658, %v671, %v673
      %v677 = vsel %vm658, %v673, %v675
      %v680 = vmul.f32 %v668, %v676
      %v681 = vmul.f32 %v669, %v677
      %v682 = vadd.f32 %v665, %v680
      %v683 = vadd.f32 %v666, %v681
      %s684 = scalar_lea.vmem %s1, 480
      %v685 = vld [vmem:[%s684] sm:$0xff]
      %v686 = vld [vmem:[%s684 + $0x8] sm:$0xff]
      %687 = vrot.lane.b32.xlu0 %v222, 96
      %v688 = vpop.permute.xlu0 %687
      %689 = vrot.lane.b32.xlu0 %v223, 96
      %v690 = vpop.permute.xlu0 %689
      %691 = vrot.lane.b32.xlu0 %v542, 96
      %v692 = vpop.permute.xlu0 %691
      %v693 = vsel %vm658, %v688, %v690
      %v694 = vsel %vm658, %v690, %v692
      %v697 = vmul.f32 %v685, %v693
      %v698 = vmul.f32 %v686, %v694
      %v699 = vadd.f32 %v682, %v697
      %v700 = vadd.f32 %v683, %v698
      %s701 = scalar_lea.vmem %s1, 496
      %v702 = vld [vmem:[%s701] sm:$0xff]
      %v703 = vld [vmem:[%s701 + $0x8] sm:$0xff]
      %704 = vrot.lane.b32.xlu0 %v246, 96
      %v705 = vpop.permute.xlu0 %704
      %706 = vrot.lane.b32.xlu0 %v247, 96
      %v707 = vpop.permute.xlu0 %706
      %708 = vrot.lane.b32.xlu0 %v561, 96
      %v709 = vpop.permute.xlu0 %708
      %v710 = vsel %vm658, %v705, %v707
      %v711 = vsel %vm658, %v707, %v709
      %v714 = vmul.f32 %v702, %v710
      %v715 = vmul.f32 %v703, %v711
      %v716 = vadd.f32 %v699, %v714
      %v717 = vadd.f32 %v700, %v715
      %s718 = scalar_lea.vmem %s1, 512
      %v719 = vld [vmem:[%s718] sm:$0xff]
      %v720 = vld [vmem:[%s718 + $0x8] sm:$0xff]
      %721 = vrot.lane.b32.xlu0 %v174, 94
      %v722 = vpop.permute.xlu0 %721
      %723 = vrot.lane.b32.xlu0 %v175, 94
      %v724 = vpop.permute.xlu0 %723
      %725 = vrot.lane.b32.xlu0 %v503, 94
      %v726 = vpop.permute.xlu0 %725
      %vm727 = vcmask 769024
      %v728 = vsel %vm727, %v722, %v724
      %v729 = vsel %vm727, %v724, %v726
      %v732 = vmul.f32 %v719, %v728
      %v733 = vmul.f32 %v720, %v729
      %v734 = vadd.f32 %v716, %v732
      %v735 = vadd.f32 %v717, %v733
      %s736 = scalar_lea.vmem %s1, 528
      %v737 = vld [vmem:[%s736] sm:$0xff]
      %v738 = vld [vmem:[%s736 + $0x8] sm:$0xff]
      %739 = vrot.lane.b32.xlu0 %v198, 94
      %v740 = vpop.permute.xlu0 %739
      %741 = vrot.lane.b32.xlu0 %v199, 94
      %v742 = vpop.permute.xlu0 %741
      %743 = vrot.lane.b32.xlu0 %v523, 94
      %v744 = vpop.permute.xlu0 %743
      %v745 = vsel %vm727, %v740, %v742
      %v746 = vsel %vm727, %v742, %v744
      %v749 = vmul.f32 %v737, %v745
      %v750 = vmul.f32 %v738, %v746
      %v751 = vadd.f32 %v734, %v749
      %v752 = vadd.f32 %v735, %v750
      %s753 = scalar_lea.vmem %s1, 544
      %v754 = vld [vmem:[%s753] sm:$0xff]
      %v755 = vld [vmem:[%s753 + $0x8] sm:$0xff]
      %756 = vrot.lane.b32.xlu0 %v222, 94
      %v757 = vpop.permute.xlu0 %756
      %758 = vrot.lane.b32.xlu0 %v223, 94
      %v759 = vpop.permute.xlu0 %758
      %760 = vrot.lane.b32.xlu0 %v542, 94
      %v761 = vpop.permute.xlu0 %760
      %v762 = vsel %vm727, %v757, %v759
      %v763 = vsel %vm727, %v759, %v761
      %v766 = vmul.f32 %v754, %v762
      %v767 = vmul.f32 %v755, %v763
      %v768 = vadd.f32 %v751, %v766
      %v769 = vadd.f32 %v752, %v767
      %s770 = scalar_lea.vmem %s1, 560
      %v771 = vld [vmem:[%s770] sm:$0xff]
      %v772 = vld [vmem:[%s770 + $0x8] sm:$0xff]
      %773 = vrot.lane.b32.xlu0 %v246, 94
      %v774 = vpop.permute.xlu0 %773
      %775 = vrot.lane.b32.xlu0 %v247, 94
      %v776 = vpop.permute.xlu0 %775
      %777 = vrot.lane.b32.xlu0 %v561, 94
      %v778 = vpop.permute.xlu0 %777
      %v779 = vsel %vm727, %v774, %v776
      %v780 = vsel %vm727, %v776, %v778
      %v783 = vmul.f32 %v771, %v779
      %v784 = vmul.f32 %v772, %v780
      %v785 = vadd.f32 %v768, %v783
      %v786 = vadd.f32 %v769, %v784
      %787 = vst [vmem:[%s170] sm:$0xff] %v785
      %788 = vst [vmem:[%s170 + $0x8] sm:$0xff] %v786
      %p789 = scmp.lt.s32.totalorder %s14, 1
      %s790 = scalar_select %p789, %s14, 1
      %s791 = smul.addr %s790, 2
      %s792 = smul.addr %s791, 8
      %s793 = scalar_lea.vmem %s3, %s792
      // Predicated region
      $region33: #{csdn_temd_forward.1} parent=31 // pred_check
        %p794 = pneg %p100
      $region34: #{csdn_temd_forward.1} parent=31 // pred_check_branch
        %796 = sbr.rel (%p794) target = $region36
      $region35: #{csdn_temd_forward.1} parent=31 // pred_region
        _
      $region36: #{csdn_temd_forward.1} parent=31 // pred_fallthru
        _
    $region32: #{csdn_temd_forward.1} parent=5 // pred_fallthru
      _
    %p797 = scmp.le.s32.totalorder 2, %s9
    // Predicated region
    $region37: #{csdn_temd_forward.1} parent=5 // pred_check
      %p798 = pneg %p797
    $region38: #{csdn_temd_forward.1} parent=5 // pred_check_branch
      %800 = sbr.rel (%p798) target = $region40
    $region39: #{csdn_temd_forward.1} parent=5 // pred_region
      %s801 = ssub.s32 %s9, 2
      // Predicated region
      $region41: #{csdn_temd_forward.1} parent=39 // pred_check
        %p802 = pneg %p106
      $region42: #{csdn_temd_forward.1} parent=39 // pred_check_branch
        %804 = sbr.rel (%p802) target = $region44
      $region43: #{csdn_temd_forward.1} parent=39 // pred_region
        %p805 = scmp.lt.s32.totalorder %s15, 1
        %s806 = scalar_select %p805, %s15, 1
        %s807 = smul.addr %s806, 2
        %s808 = smul.addr %s807, 8
        %s809 = scalar_lea.vmem %s3, %s808
      $region44: #{csdn_temd_forward.1} parent=39 // pred_fallthru
        _
    $region40: #{csdn_temd_forward.1} parent=5 // pred_fallthru
      _
  $region6: #{csdn_temd_forward.1} parent=0 // loop_footer
    %s13 = sadd.s32 1, %s9
  $region7: #{csdn_temd_forward.1} parent=0 // loop_footer_branch
    %8 = sbr.rel target = $region3
  $region8: #{csdn_temd_forward.1} parent=0 // loop_exit
    _

</llo_original>
